<compile_context>
chip_gen: v7x
topology: tpu7x:2x2x1
jax: 0.10.0
libtpu: 0.0.40
codegen_flags: <defaults>
</compile_context>

<pallas_src>
import jax
import jax.numpy as jnp
from jax import lax
from jax.experimental import pallas as pl
from jax.experimental.pallas import tpu as pltpu

BN_EPS = 1e-5


def _round_up(n, m):
    return ((n + m - 1) // m) * m


# ---------------------------------------------------------------------------
# Kernel: one batch tile.
#   x_ref  : [TB, D]  (f32, raw layout)   w1_ref : [H1, D]   b1_ref : [H1, 1]
#   o_ref  : [1,  TB] (f32)               w2_ref : [H2, H1]  b2_ref : [H2, 1]
#                                         w3_ref : [1,  H2]  b3_ref : [1,  1]
# BN1/BN2 are already folded into (w2, b2) / (w3, b3).
# ---------------------------------------------------------------------------
def nn_forward_kernel(x_ref, w1_ref, b1_ref, w2_ref, b2_ref, w3_ref, b3_ref, o_ref):
    xb = x_ref[...].astype(w1_ref.dtype)                                  # [TB, D] bf16

    # fc1 + relu   (BN1 folded into fc2).  Contract D = dim 1 of both operands
    # -> result [H1, TB] with batch on lanes, no explicit transpose needed.
    h1 = lax.dot_general(w1_ref[...], xb, (((1,), (1,)), ((), ())),
                         preferred_element_type=jnp.float32) + b1_ref[...]
    h1 = jnp.maximum(h1, 0.0).astype(w2_ref.dtype)                        # [H1, TB] bf16

    # fc2 (BN1-folded) + relu   (BN2 folded into fc3)
    h2 = jnp.dot(w2_ref[...], h1, preferred_element_type=jnp.float32) + b2_ref[...]
    h2 = jnp.maximum(h2, 0.0).astype(w3_ref.dtype)                        # [H2, TB] bf16

    # fc3 (BN2-folded) + sigmoid
    z = jnp.dot(w3_ref[...], h2, preferred_element_type=jnp.float32) + b3_ref[...]
    o_ref[...] = jax.nn.sigmoid(z)                                        # [1, TB] f32
    # TODO(synk): training-mode dropout / batch-statistics BN not implemented
    # (inference semantics only).


# ---------------------------------------------------------------------------
# Wrapper-side BN folding (eval mode):
#   bn(h) = s*h + t  with  s = gamma * rsqrt(var+eps),  t = beta - mean*s
#   since bn follows relu, fold it into the *next* Linear:
#     W_next @ (s*h + t) + b_next  =  (W_next * s) @ h + (W_next @ t + b_next)
# ---------------------------------------------------------------------------
def fold_params(p, weight_dtype=jnp.bfloat16):
    s1 = p["g1"] * jax.lax.rsqrt(p["v1"] + BN_EPS)
    t1 = p["beta1"] - p["m1"] * s1
    s2 = p["g2"] * jax.lax.rsqrt(p["v2"] + BN_EPS)
    t2 = p["beta2"] - p["m2"] * s2

    w1 = p["w1"]                                  # [H1, D]
    b1 = p["b1"]                                  # [H1]
    w2 = p["w2"] * s1[None, :]                    # [H2, H1]
    b2 = p["w2"] @ t1 + p["b2"]                   # [H2]
    w3 = p["w3"] * s2[None, :]                    # [1, H2]
    b3 = p["w3"] @ t2 + p["b3"]                   # [1]

    return (w1.astype(weight_dtype), b1.reshape(-1, 1).astype(jnp.float32),
            w2.astype(weight_dtype), b2.reshape(-1, 1).astype(jnp.float32),
            w3.astype(weight_dtype), b3.reshape(-1, 1).astype(jnp.float32))


def nn_forward(x, params, *, tile_b=8192, weight_dtype=jnp.bfloat16):
    """x: [B, input_dim] float32.  Returns [B, 1] float32 sigmoid probabilities."""
    B, D = x.shape
    w1, b1, w2, b2, w3, b3 = fold_params(params, weight_dtype)
    H1 = w1.shape[0]
    H2 = w2.shape[0]

    # Lane-dense batch tile (multiple of 128), large to amortize grid-step
    # overhead, capped near ceil(B/2) so the grid has >=2 steps (v7x 2-TC).
    tile_b = max(128, (tile_b // 128) * 128)
    half = _round_up(pl.cdiv(B, 2), 128)
    tb = max(128, min(tile_b, half))
    grid = (pl.cdiv(B, tb),)
    Bp = grid[0] * tb  # output is padded to whole tiles (lane-dense, unmasked vst)

    if tb > 16384:
        # double-buffered f32 x tile + f32/bf16 [H1,tb]/[H2,tb] intermediates
        need = 2 * tb * D * 4 + tb * (H1 + H2) * (4 + 2) + (8 << 20)
        compiler_params = pltpu.CompilerParams(
            dimension_semantics=("parallel",),
            vmem_limit_bytes=min(max(need, 32 << 20), 60 << 20))
    else:
        compiler_params = pltpu.CompilerParams(dimension_semantics=("parallel",))

    const = lambda i: (0, 0)  # weights stay VMEM-resident across the grid
    out = pl.pallas_call(
        nn_forward_kernel,
        out_shape=jax.ShapeDtypeStruct((1, Bp), jnp.float32),
        grid=grid,
        in_specs=[
            pl.BlockSpec((tb, D), lambda i: (i, 0)),   # raw x tile (streamed);
            # last block may read unspecified padding rows -> safe: nothing is
            # accumulated across batch and out[:B] slices them off.
            pl.BlockSpec((H1, D), const),              # w1
            pl.BlockSpec((H1, 1), const),              # b1
            pl.BlockSpec((H2, H1), const),             # w2 (BN1 folded)
            pl.BlockSpec((H2, 1), const),              # b2 (BN1 folded)
            pl.BlockSpec((1, H2), const),              # w3 (BN2 folded)
            pl.BlockSpec((1, 1), const),               # b3 (BN2 folded)
        ],
        out_specs=pl.BlockSpec((1, tb), lambda i: (0, i)),
        compiler_params=compiler_params,
    )(x, w1, b1, w2, b2, w3, b3)

    return out[0, :B].reshape(B, 1)


# ---------------------------------------------------------------------------
# Parameter init (PyTorch layout: W [out, in], b [out]) and pure-JAX reference.
# ---------------------------------------------------------------------------
def init_params(key, input_dim, hidden_dim1=64, hidden_dim2=32):
    ks = jax.random.split(key, 10)

    def linear_init(kw, kb, fan_in, fan_out):
        bound = 1.0 / (fan_in ** 0.5)
        w = jax.random.uniform(kw, (fan_out, fan_in), jnp.float32, -bound, bound)
        b = jax.random.uniform(kb, (fan_out,), jnp.float32, -bound, bound)
        return w, b

    w1, b1 = linear_init(ks[0], ks[1], input_dim, hidden_dim1)
    w2, b2 = linear_init(ks[2], ks[3], hidden_dim1, hidden_dim2)
    w3, b3 = linear_init(ks[4], ks[5], hidden_dim2, 1)

    g1 = jnp.ones((hidden_dim1,), jnp.float32)
    beta1 = jnp.zeros((hidden_dim1,), jnp.float32)
    m1 = 0.1 * jax.random.normal(ks[6], (hidden_dim1,), jnp.float32)
    v1 = 1.0 + 0.1 * jax.random.uniform(ks[7], (hidden_dim1,), jnp.float32)

    g2 = jnp.ones((hidden_dim2,), jnp.float32)
    beta2 = jnp.zeros((hidden_dim2,), jnp.float32)
    m2 = 0.1 * jax.random.normal(ks[8], (hidden_dim2,), jnp.float32)
    v2 = 1.0 + 0.1 * jax.random.uniform(ks[9], (hidden_dim2,), jnp.float32)

    return dict(
        w1=w1, b1=b1, g1=g1, beta1=beta1, m1=m1, v1=v1,
        w2=w2, b2=b2, g2=g2, beta2=beta2, m2=m2, v2=v2,
        w3=w3, b3=b3,
    )


def nn_forward_ref(x, p):
    h1 = jnp.maximum(x @ p["w1"].T + p["b1"], 0.0)
    h1 = (h1 - p["m1"]) * jax.lax.rsqrt(p["v1"] + BN_EPS) * p["g1"] + p["beta1"]
    h2 = jnp.maximum(h1 @ p["w2"].T + p["b2"], 0.0)
    h2 = (h2 - p["m2"]) * jax.lax.rsqrt(p["v2"] + BN_EPS) * p["g2"] + p["beta2"]
    return jax.nn.sigmoid(h2 @ p["w3"].T + p["b3"])


if __name__ == "__main__":
    key = jax.random.PRNGKey(0)
    k_x, k_p = jax.random.split(key)

    input_dim = 21  # number of software-defect features in the tabular dataset
    params = init_params(k_p, input_dim, hidden_dim1=64, hidden_dim2=32)

    # Small single-tile case.
    x = jax.random.normal(k_x, (16, input_dim), jnp.float32)
    out = jax.block_until_ready(nn_forward(x, params))
    ref = nn_forward_ref(x, params)
    assert out.shape == (16, 1)
    assert jnp.allclose(out, ref, atol=2e-2, rtol=0.0), (
        f"max diff {float(jnp.max(jnp.abs(out - ref)))}")

    # Multi-tile grid with a partial last block (640 = 2.5 * 256).
    x2 = jax.random.normal(k_x, (640, input_dim), jnp.float32)
    out2 = jax.block_until_ready(nn_forward(x2, params, tile_b=256))
    ref2 = nn_forward_ref(x2, params)
    assert out2.shape == (640, 1)
    assert jnp.allclose(out2, ref2, atol=2e-2, rtol=0.0), (
        f"max diff {float(jnp.max(jnp.abs(out2 - ref2)))}")

    # Default-tile path: tb is capped to ~ceil(B/2) -> grid of 2 (2-TC on v7x),
    # partial last block.
    x3 = jax.random.normal(k_x, (9000, input_dim), jnp.float32)
    out3 = jax.block_until_ready(nn_forward(x3, params))
    ref3 = nn_forward_ref(x3, params)
    assert out3.shape == (9000, 1)
    assert jnp.allclose(out3, ref3, atol=2e-2, rtol=0.0), (
        f"max diff {float(jnp.max(jnp.abs(out3 - ref3)))}")

    print("KERNEL_OK")
</pallas_src>

<mosaic_0001>
module attributes {stable_mosaic.version = 11 : i64} {
  func.func @nn_forward_kernel(%arg0: i32, %arg1: memref<128x21xf32, #tpu.memory_space<vmem>>, %arg2: memref<64x21xbf16, #tpu.memory_space<vmem>>, %arg3: memref<64x1xf32, #tpu.memory_space<vmem>>, %arg4: memref<32x64xbf16, #tpu.memory_space<vmem>>, %arg5: memref<32x1xf32, #tpu.memory_space<vmem>>, %arg6: memref<1x32xbf16, #tpu.memory_space<vmem>>, %arg7: memref<1x1xf32, #tpu.memory_space<vmem>>, %arg8: memref<1x128xf32, #tpu.memory_space<vmem>>) attributes {dimension_semantics = [#tpu.dimension_semantics<parallel>], iteration_bounds = array<i64: 1>, scalar_prefetch = 0 : i64, scratch_operands = 0 : i64, tpu.core_type = #tpu.core_type<tc>, window_params = [{transform_indices = @transform_0, window_bounds = array<i64: 128, 21>}, {pipeline_mode = #tpu.pipeline_mode<synchronous>, transform_indices = @transform_1, window_bounds = array<i64: 64, 21>}, {pipeline_mode = #tpu.pipeline_mode<synchronous>, transform_indices = @transform_2, window_bounds = array<i64: 64, 1>}, {pipeline_mode = #tpu.pipeline_mode<synchronous>, transform_indices = @transform_3, window_bounds = array<i64: 32, 64>}, {pipeline_mode = #tpu.pipeline_mode<synchronous>, transform_indices = @transform_4, window_bounds = array<i64: 32, 1>}, {pipeline_mode = #tpu.pipeline_mode<synchronous>, transform_indices = @transform_5, window_bounds = array<i64: 1, 32>}, {pipeline_mode = #tpu.pipeline_mode<synchronous>, transform_indices = @transform_6, window_bounds = array<i64: 1, 1>}, {transform_indices = @transform_7, window_bounds = array<i64: 1, 128>}]} {
    %c0 = arith.constant 0 : index
    %c0_0 = arith.constant 0 : index
    %0 = vector.load %arg1[%c0, %c0_0] : memref<128x21xf32, #tpu.memory_space<vmem>>, vector<128x21xf32>
    %1 = arith.truncf %0 : vector<128x21xf32> to vector<128x21xbf16>
    %c0_1 = arith.constant 0 : index
    %c0_2 = arith.constant 0 : index
    %2 = vector.load %arg2[%c0_1, %c0_2] : memref<64x21xbf16, #tpu.memory_space<vmem>>, vector<64x21xbf16>
    %cst = arith.constant dense<0.000000e+00> : vector<64x128xf32>
    %3 = tpu.matmul %2, %1, %cst {dimension_numbers = #tpu.dot_dimension_numbers<[1], [1], [0], [0], [0, 0, 1, 0], [], []>} : vector<64x21xbf16>, vector<128x21xbf16>, vector<64x128xf32> -> vector<64x128xf32>
    %c0_3 = arith.constant 0 : index
    %c0_4 = arith.constant 0 : index
    %4 = vector.load %arg3[%c0_3, %c0_4] : memref<64x1xf32, #tpu.memory_space<vmem>>, vector<64x1xf32>
    %5 = vector.broadcast %4 : vector<64x1xf32> to vector<64x128xf32>
    %6 = arith.addf %3, %5 : vector<64x128xf32>
    %cst_5 = arith.constant 0.000000e+00 : f32
    %7 = vector.broadcast %cst_5 : f32 to vector<64x128xf32>
    %8 = arith.maximumf %6, %7 : vector<64x128xf32>
    %9 = arith.truncf %8 : vector<64x128xf32> to vector<64x128xbf16>
    %c0_6 = arith.constant 0 : index
    %c0_7 = arith.constant 0 : index
    %10 = vector.load %arg4[%c0_6, %c0_7] : memref<32x64xbf16, #tpu.memory_space<vmem>>, vector<32x64xbf16>
    %cst_8 = arith.constant dense<0.000000e+00> : vector<32x128xf32>
    %11 = tpu.matmul %10, %9, %cst_8 {dimension_numbers = #tpu.dot_dimension_numbers<[1], [0], [0], [1], [0, 0, 1, 1], [], []>} : vector<32x64xbf16>, vector<64x128xbf16>, vector<32x128xf32> -> vector<32x128xf32>
    %c0_9 = arith.constant 0 : index
    %c0_10 = arith.constant 0 : index
    %12 = vector.load %arg5[%c0_9, %c0_10] : memref<32x1xf32, #tpu.memory_space<vmem>>, vector<32x1xf32>
    %13 = vector.broadcast %12 : vector<32x1xf32> to vector<32x128xf32>
    %14 = arith.addf %11, %13 : vector<32x128xf32>
    %cst_11 = arith.constant 0.000000e+00 : f32
    %15 = vector.broadcast %cst_11 : f32 to vector<32x128xf32>
    %16 = arith.maximumf %14, %15 : vector<32x128xf32>
    %17 = arith.truncf %16 : vector<32x128xf32> to vector<32x128xbf16>
    %c0_12 = arith.constant 0 : index
    %c0_13 = arith.constant 0 : index
    %18 = vector.load %arg6[%c0_12, %c0_13] : memref<1x32xbf16, #tpu.memory_space<vmem>>, vector<1x32xbf16>
    %cst_14 = arith.constant dense<0.000000e+00> : vector<1x128xf32>
    %19 = tpu.matmul %18, %17, %cst_14 {dimension_numbers = #tpu.dot_dimension_numbers<[1], [0], [0], [1], [0, 0, 1, 1], [], []>} : vector<1x32xbf16>, vector<32x128xbf16>, vector<1x128xf32> -> vector<1x128xf32>
    %c0_15 = arith.constant 0 : index
    %c0_16 = arith.constant 0 : index
    %20 = vector.load %arg7[%c0_15, %c0_16] : memref<1x1xf32, #tpu.memory_space<vmem>>, vector<1x1xf32>
    %21 = vector.broadcast %20 : vector<1x1xf32> to vector<1x128xf32>
    %22 = arith.addf %19, %21 : vector<1x128xf32>
    %23 = arith.negf %22 : vector<1x128xf32>
    %24 = math.exp %23 : vector<1x128xf32>
    %cst_17 = arith.constant 1.000000e+00 : f32
    %25 = vector.broadcast %cst_17 : f32 to vector<1x128xf32>
    %26 = arith.addf %25, %24 : vector<1x128xf32>
    %27 = arith.divf %25, %26 : vector<1x128xf32>
    %c0_18 = arith.constant 0 : index
    %c0_19 = arith.constant 0 : index
    %28 = vector.load %arg8[%c0_18, %c0_19] : memref<1x128xf32, #tpu.memory_space<vmem>>, vector<1x128xf32>
    tpu.vector_store %arg8[%c0_18, %c0_19], %27 {strides = array<i32>} : memref<1x128xf32, #tpu.memory_space<vmem>>, vector<1x128xf32>,
    return
  }
  func.func @transform_0(%arg0: i32) -> (i32, i32) {
    %c0_i32 = arith.constant 0 : i32
    %c0_i32_0 = arith.constant 0 : i32
    return %arg0, %c0_i32 : i32, i32
  }
  func.func @transform_1(%arg0: i32) -> (i32, i32) {
    %c0_i32 = arith.constant 0 : i32
    %c0_i32_0 = arith.constant 0 : i32
    %c0_i32_1 = arith.constant 0 : i32
    return %c0_i32, %c0_i32_0 : i32, i32
  }
  func.func @transform_2(%arg0: i32) -> (i32, i32) {
    %c0_i32 = arith.constant 0 : i32
    %c0_i32_0 = arith.constant 0 : i32
    %c0_i32_1 = arith.constant 0 : i32
    return %c0_i32, %c0_i32_0 : i32, i32
  }
  func.func @transform_3(%arg0: i32) -> (i32, i32) {
    %c0_i32 = arith.constant 0 : i32
    %c0_i32_0 = arith.constant 0 : i32
    %c0_i32_1 = arith.constant 0 : i32
    return %c0_i32, %c0_i32_0 : i32, i32
  }
  func.func @transform_4(%arg0: i32) -> (i32, i32) {
    %c0_i32 = arith.constant 0 : i32
    %c0_i32_0 = arith.constant 0 : i32
    %c0_i32_1 = arith.constant 0 : i32
    return %c0_i32, %c0_i32_0 : i32, i32
  }
  func.func @transform_5(%arg0: i32) -> (i32, i32) {
    %c0_i32 = arith.constant 0 : i32
    %c0_i32_0 = arith.constant 0 : i32
    %c0_i32_1 = arith.constant 0 : i32
    return %c0_i32, %c0_i32_0 : i32, i32
  }
  func.func @transform_6(%arg0: i32) -> (i32, i32) {
    %c0_i32 = arith.constant 0 : i32
    %c0_i32_0 = arith.constant 0 : i32
    %c0_i32_1 = arith.constant 0 : i32
    return %c0_i32, %c0_i32_0 : i32, i32
  }
  func.func @transform_7(%arg0: i32) -> (i32, i32) {
    %c0_i32 = arith.constant 0 : i32
    %c0_i32_0 = arith.constant 0 : i32
    return %c0_i32, %arg0 : i32, i32
  }
}

</mosaic_0001>

<llo_original>
// kernel: tpu_custom_call.1
$region0: #{tpu_custom_call.1}
  #allocation0 [shape = 'u32[]', space=smem, size = 0x4, offset = 0x4, fixed_abs, tag = 'smem constant byte address 0x4 - core index']
  #allocation1 [shape = 'u32[144,128]{1,0:T(1,128)}', space=vmem, size = 0x12000, scoped, tag = 'internal scratch']
  #allocation2 [shape = 'f32[1,1]{1,0:T(1,128)S(1)}', space=vmem, size = 0x200, scoped, tag = 'scoped memory for tpu_custom_call.1']
  %s0 = inlined_call_operand.vmem [shape: f32[16,21], index: 0, kind: input, shape index: {}]
  %s1 = inlined_call_operand.vmem [shape: bf16[64,21], index: 1, kind: input, shape index: {}]
  %s2 = inlined_call_operand.vmem [shape: f32[64,1], index: 2, kind: input, shape index: {}]
  %s3 = inlined_call_operand.vmem [shape: bf16[32,64], index: 3, kind: input, shape index: {}]
  %s4 = inlined_call_operand.vmem [shape: f32[32,1], index: 4, kind: input, shape index: {}]
  %s5 = inlined_call_operand.vmem [shape: bf16[1,32], index: 5, kind: input, shape index: {}]
  %s6 = inlined_call_operand.<no memory space> [shape: f32[1,1], index: 6, kind: input, shape index: {}]
  %s7 = inlined_call_operand.hbm [shape: f32[1,128], index: 7, kind: output, shape index: {}]
  %s8 = sld [smem:[#allocation0]]
  $region38: #{tpu_custom_call.1} parent=0
    _
  %s10 = ssub.s32 1, %s8
  %s11 = scalar_select 0, %s10, %s8
  %v12 = vstv %s6
  %13 = vst [vmem:[#allocation2] sm:$0x1] %v12
  $region1: #{tpu_custom_call.1} parent=0
    #allocation3 [shape = 'u8[512]{0}', space=vmem, size = 0x400, scoped, tag = 'output window, operand 0, single buffered']
    #allocation4 [shape = 's32[1]{0}', space=sflag, size = 0x4, scoped, tag = 'scoped memory for tpu_custom_call.1']
    %14 = vsyncpa [#allocation4], 0
    // Predicated region
    $region2: #{tpu_custom_call.1} parent=1 // pred_check
      _
    $region3: #{tpu_custom_call.1} parent=1 // pred_check_branch
      %16 = sbr.rel (0) target = $region5
    $region4: #{tpu_custom_call.1} parent=1 // pred_region
      _
    $region5: #{tpu_custom_call.1} parent=1 // pred_fallthru
      _
    // Predicated region
    $region6: #{tpu_custom_call.1} parent=1 // pred_check
      _
    $region7: #{tpu_custom_call.1} parent=1 // pred_check_branch
      %18 = sbr.rel (0) target = $region9
    $region8: #{tpu_custom_call.1} parent=1 // pred_region
      _
    $region9: #{tpu_custom_call.1} parent=1 // pred_fallthru
      _
    // Predicated region
    $region10: #{tpu_custom_call.1} parent=1 // pred_check
      _
    $region11: #{tpu_custom_call.1} parent=1 // pred_check_branch
      %20 = sbr.rel (0) target = $region13
    $region12: #{tpu_custom_call.1} parent=1 // pred_region
      _
    $region13: #{tpu_custom_call.1} parent=1 // pred_fallthru
      _
    // Predicated region
    $region14: #{tpu_custom_call.1} parent=1 // pred_check
      _
    $region15: #{tpu_custom_call.1} parent=1 // pred_check_branch
      %22 = sbr.rel (0) target = $region17
    $region16: #{tpu_custom_call.1} parent=1 // pred_region
      _
    $region17: #{tpu_custom_call.1} parent=1 // pred_fallthru
      _
    // Predicated region
    $region18: #{tpu_custom_call.1} parent=1 // pred_check
      _
    $region19: #{tpu_custom_call.1} parent=1 // pred_check_branch
      %24 = sbr.rel (0) target = $region21
    $region20: #{tpu_custom_call.1} parent=1 // pred_region
      _
    $region21: #{tpu_custom_call.1} parent=1 // pred_fallthru
      _
    // Predicated region
    $region22: #{tpu_custom_call.1} parent=1 // pred_check
      _
    $region23: #{tpu_custom_call.1} parent=1 // pred_check_branch
      %26 = sbr.rel (0) target = $region25
    $region24: #{tpu_custom_call.1} parent=1 // pred_region
      _
    $region25: #{tpu_custom_call.1} parent=1 // pred_fallthru
      _
    // Predicated region
    $region26: #{tpu_custom_call.1} parent=1 // pred_check
      _
    $region27: #{tpu_custom_call.1} parent=1 // pred_check_branch
      %28 = sbr.rel (0) target = $region29
    $region28: #{tpu_custom_call.1} parent=1 // pred_region
      _
    $region29: #{tpu_custom_call.1} parent=1 // pred_fallthru
      _
    %v30 = vld [vmem:[%s0] sm:$0xff]
    %v31 = vld [vmem:[%s0 + $0x8] sm:$0xff]
    %v32 = vld [vmem:[%s0 + $0x10] sm:$0xff]
    %v33 = vld [vmem:[%s0 + $0x18] sm:$0xff]
    %v34 = vld [vmem:[%s0 + $0x20] sm:$0xff]
    %v35 = vld [vmem:[%s0 + $0x28] sm:$0xff]
    %v36 = vld [vmem:[%s0 + $0x30] sm:$0xff]
    %v37 = vld [vmem:[%s0 + $0x38] sm:$0xff]
    %v38 = vld [vmem:[%s0 + $0x40] sm:$0xff]
    %v39 = vld [vmem:[%s0 + $0x48] sm:$0xff]
    %v40 = vld [vmem:[%s0 + $0x50] sm:$0xff]
    %v41 = vld [vmem:[%s0 + $0x58] sm:$0xff]
    %v42 = vld [vmem:[%s0 + $0x60] sm:$0xff]
    %v43 = vld [vmem:[%s0 + $0x68] sm:$0xff]
    %v44 = vld [vmem:[%s0 + $0x70] sm:$0xff]
    %v45 = vld [vmem:[%s0 + $0x78] sm:$0xff]
    %v46 = vpack.c.bf16 %v31, %v30
    %v47 = vpack.c.bf16 %v33, %v32
    %v48 = vpack.c.bf16 %v35, %v34
    %v49 = vpack.c.bf16 %v37, %v36
    %v50 = vpack.c.bf16 %v39, %v38
    %v51 = vpack.c.bf16 %v41, %v40
    %v52 = vpack.c.bf16 %v43, %v42
    %v53 = vpack.c.bf16 %v45, %v44
    %v54 = vld [vmem:[%s1] sm:$0xf]
    %v55 = vld [vmem:[%s1 + $0x4] sm:$0xf]
    %v56 = vld [vmem:[%s1 + $0x8] sm:$0xf]
    %v57 = vld [vmem:[%s1 + $0xc] sm:$0xf]
    %v58 = vld [vmem:[%s1 + $0x10] sm:$0xf]
    %v59 = vld [vmem:[%s1 + $0x14] sm:$0xf]
    %v60 = vld [vmem:[%s1 + $0x18] sm:$0xf]
    %v61 = vld [vmem:[%s1 + $0x1c] sm:$0xf]
    %v62 = vld [vmem:[%s2] sm:$0xff]
    %v63 = vld [vmem:[%s2 + $0x8] sm:$0xff]
    %v64 = vld [vmem:[%s2 + $0x10] sm:$0xff]
    %v65 = vld [vmem:[%s2 + $0x18] sm:$0xff]
    %v66 = vld [vmem:[%s2 + $0x20] sm:$0xff]
    %v67 = vld [vmem:[%s2 + $0x28] sm:$0xff]
    %v68 = vld [vmem:[%s2 + $0x30] sm:$0xff]
    %v69 = vld [vmem:[%s2 + $0x38] sm:$0xff]
    %71 = vset.pattern.permute.xlu0 0
    %72 = vperm.xlu0 %71, %v62
    %v73 = vpop.permute.xlu0 %72
    %76 = vset.pattern.permute.xlu0 0
    %77 = vperm.xlu0 %76, %v63
    %v78 = vpop.permute.xlu0 %77
    %81 = vset.pattern.permute.xlu0 0
    %82 = vperm.xlu0 %81, %v64
    %v83 = vpop.permute.xlu0 %82
    %86 = vset.pattern.permute.xlu0 0
    %87 = vperm.xlu0 %86, %v65
    %v88 = vpop.permute.xlu0 %87
    %91 = vset.pattern.permute.xlu0 0
    %92 = vperm.xlu0 %91, %v66
    %v93 = vpop.permute.xlu0 %92
    %96 = vset.pattern.permute.xlu0 0
    %97 = vperm.xlu0 %96, %v67
    %v98 = vpop.permute.xlu0 %97
    %101 = vset.pattern.permute.xlu0 0
    %102 = vperm.xlu0 %101, %v68
    %v103 = vpop.permute.xlu0 %102
    %106 = vset.pattern.permute.xlu0 0
    %107 = vperm.xlu0 %106, %v69
    %v108 = vpop.permute.xlu0 %107
    %v118 = vunpack.c.l.b16 %v54
    %v119 = vunpack.c.l.b16 %v55
    %v120 = vunpack.c.l.b16 %v56
    %v121 = vunpack.c.l.b16 %v57
    %v122 = vunpack.c.l.b16 %v58
    %v123 = vunpack.c.l.b16 %v59
    %v124 = vunpack.c.l.b16 %v60
    %v125 = vunpack.c.l.b16 %v61
    %v126 = vpack.c.b16 %v119, %v118
    %v127 = vpack.c.b16 %v121, %v120
    %v128 = vpack.c.b16 %v123, %v122
    %v129 = vpack.c.b16 %v125, %v124
    %vm130 = vcmask 171008
    %v132 = vsel %vm130, %v126, 0
    %v135 = vsel %vm130, %v127, 0
    %v138 = vsel %vm130, %v128, 0
    %v141 = vsel %vm130, %v129, 0
    %v144 = vsel %vm130, %v46, 0
    %v147 = vsel %vm130, %v47, 0
    %v150 = vsel %vm130, %v48, 0
    %v153 = vsel %vm130, %v49, 0
    %v156 = vsel %vm130, %v50, 0
    %v159 = vsel %vm130, %v51, 0
    %v162 = vsel %vm130, %v52, 0
    %v165 = vsel %vm130, %v53, 0
    %167 = vmatprep.subr.bf16.mxu0 0
    %168 = vmatpush1.bf16.xpose.msra.mxu0 %v144
    %169 = vmatprep.subr.bf16.mxu0 0
    %170 = vmatpush1.bf16.xpose.msra.mxu0 %v147
    %171 = vmatprep.subr.bf16.mxu0 0
    %172 = vmatpush1.bf16.xpose.msra.mxu0 %v150
    %173 = vmatprep.subr.bf16.mxu0 0
    %174 = vmatpush1.bf16.xpose.msra.mxu0 %v153
    %175 = vmatprep.subr.bf16.mxu0 0
    %176 = vmatpush1.bf16.xpose.msra.mxu0 %v156
    %177 = vmatprep.subr.bf16.mxu0 0
    %178 = vmatpush1.bf16.xpose.msra.mxu0 %v159
    %179 = vmatprep.subr.bf16.mxu0 0
    %180 = vmatpush1.bf16.xpose.msra.mxu0 %v162
    %181 = vmatprep.subr.bf16.mxu0 0
    %182 = vmatpush1.bf16.xpose.msra.mxu0 %v165
    %183 = vmatprep.subr.bf16.mxu0 0
    %184 = vmatpush1.bf16.xpose.msra.mxu0 0
    %185 = vmatprep.subr.bf16.mxu0 0
    %186 = vmatpush1.bf16.xpose.msra.mxu0 0
    %187 = vmatprep.subr.bf16.mxu0 0
    %188 = vmatpush1.bf16.xpose.msra.mxu0 0
    %189 = vmatprep.subr.bf16.mxu0 0
    %190 = vmatpush1.bf16.xpose.msra.mxu0 0
    %191 = vmatprep.subr.bf16.mxu0 0
    %192 = vmatpush1.bf16.xpose.msra.mxu0 0
    %193 = vmatprep.subr.bf16.mxu0 0
    %194 = vmatpush1.bf16.xpose.msra.mxu0 0
    %195 = vmatprep.subr.bf16.mxu0 0
    %196 = vmatpush1.bf16.xpose.msra.mxu0 0
    %197 = vmatprep.subr.bf16.mxu0 0
    %198 = vmatpush1.bf16.xpose.msra.mxu0 0
    %199 = vmatprep.mubr.bf16.mxu0 0
    %200 = vmatmul.mubr.bf16.gmra.mrb[0].mxu0 %v132
    %v201 = vpop.f32.mrb[0].mxu0
    %v202 = vadd.f32 %v73, %v201
    %v203 = vpop.f32.mrb[0].mxu0
    %v204 = vpop.f32.mrb[0].mxu0
    %v205 = vadd.f32 %v78, %v204
    %v206 = vpop.f32.mrb[0].mxu0
    %207 = vmatprep.mubr.bf16.mxu0 0
    %208 = vmatmul.mubr.bf16.gmra.mrb[0].mxu0 %v135
    %v209 = vpop.f32.mrb[0].mxu0
    %v210 = vadd.f32 %v83, %v209
    %v211 = vpop.f32.mrb[0].mxu0
    %v212 = vpop.f32.mrb[0].mxu0
    %v213 = vadd.f32 %v88, %v212
    %v214 = vpop.f32.mrb[0].mxu0
    %215 = vmatprep.mubr.bf16.mxu0 0
    %216 = vmatmul.mubr.bf16.gmra.mrb[0].mxu0 %v138
    %v217 = vpop.f32.mrb[0].mxu0
    %v218 = vadd.f32 %v93, %v217
    %v219 = vpop.f32.mrb[0].mxu0
    %v220 = vpop.f32.mrb[0].mxu0
    %v221 = vadd.f32 %v98, %v220
    %v222 = vpop.f32.mrb[0].mxu0
    %223 = vmatprep.mubr.bf16.mxu0 0
    %224 = vmatmul.mubr.bf16.gmra.mrb[0].mxu0 %v141
    %v225 = vpop.f32.mrb[0].mxu0
    %v226 = vadd.f32 %v103, %v225
    %v227 = vpop.f32.mrb[0].mxu0
    %v228 = vpop.f32.mrb[0].mxu0
    %v229 = vadd.f32 %v108, %v228
    %v230 = vpop.f32.mrb[0].mxu0
    %231 = vdwg.mxu0
    %v232 = vmax.f32 %v202, 0.0
    %v233 = vmax.f32 %v205, 0.0
    %v234 = vmax.f32 %v210, 0.0
    %v235 = vmax.f32 %v213, 0.0
    %v236 = vmax.f32 %v218, 0.0
    %v237 = vmax.f32 %v221, 0.0
    %v238 = vmax.f32 %v226, 0.0
    %v239 = vmax.f32 %v229, 0.0
    %v240 = vpack.c.bf16 %v233, %v232
    %v241 = vpack.c.bf16 %v235, %v234
    %v242 = vpack.c.bf16 %v237, %v236
    %v243 = vpack.c.bf16 %v239, %v238
    %v244 = vld [vmem:[%s3] sm:$0xf]
    %v245 = vld [vmem:[%s3 + $0x4] sm:$0xf]
    %v246 = vld [vmem:[%s3 + $0x8] sm:$0xf]
    %v247 = vld [vmem:[%s3 + $0xc] sm:$0xf]
    %v248 = vld [vmem:[%s4] sm:$0xff]
    %v249 = vld [vmem:[%s4 + $0x8] sm:$0xff]
    %v250 = vld [vmem:[%s4 + $0x10] sm:$0xff]
    %v251 = vld [vmem:[%s4 + $0x18] sm:$0xff]
    %253 = vset.pattern.permute.xlu0 0
    %254 = vperm.xlu0 %253, %v248
    %v255 = vpop.permute.xlu0 %254
    %258 = vset.pattern.permute.xlu0 0
    %259 = vperm.xlu0 %258, %v249
    %v260 = vpop.permute.xlu0 %259
    %263 = vset.pattern.permute.xlu0 0
    %264 = vperm.xlu0 %263, %v250
    %v265 = vpop.permute.xlu0 %264
    %268 = vset.pattern.permute.xlu0 0
    %269 = vperm.xlu0 %268, %v251
    %v270 = vpop.permute.xlu0 %269
    %v276 = vunpack.c.l.b16 %v244
    %v277 = vunpack.c.l.b16 %v245
    %v278 = vunpack.c.l.b16 %v246
    %v279 = vunpack.c.l.b16 %v247
    %v280 = vpack.c.b16 %v277, %v276
    %v281 = vpack.c.b16 %v279, %v278
    %vm282 = vcmask 523264
    %v284 = vsel %vm282, %v280, 0
    %v287 = vsel %vm282, %v281, 0
    %289 = vmatprep.subr.bf16.mxu0 0
    %290 = vmatpush1.bf16.msra.mxu0 %v240
    %291 = vmatprep.subr.bf16.mxu0 0
    %292 = vmatpush1.bf16.msra.mxu0 %v241
    %293 = vmatprep.subr.bf16.mxu0 0
    %294 = vmatpush1.bf16.msra.mxu0 %v242
    %295 = vmatprep.subr.bf16.mxu0 0
    %296 = vmatpush1.bf16.msra.mxu0 %v243
    %297 = vmatprep.subr.bf16.mxu0 0
    %298 = vmatpush1.bf16.msra.mxu0 0
    %299 = vmatprep.subr.bf16.mxu0 0
    %300 = vmatpush1.bf16.msra.mxu0 0
    %301 = vmatprep.subr.bf16.mxu0 0
    %302 = vmatpush1.bf16.msra.mxu0 0
    %303 = vmatprep.subr.bf16.mxu0 0
    %304 = vmatpush1.bf16.msra.mxu0 0
    %305 = vmatprep.subr.bf16.mxu0 0
    %306 = vmatpush1.bf16.msra.mxu0 0
    %307 = vmatprep.subr.bf16.mxu0 0
    %308 = vmatpush1.bf16.msra.mxu0 0
    %309 = vmatprep.subr.bf16.mxu0 0
    %310 = vmatpush1.bf16.msra.mxu0 0
    %311 = vmatprep.subr.bf16.mxu0 0
    %312 = vmatpush1.bf16.msra.mxu0 0
    %313 = vmatprep.subr.bf16.mxu0 0
    %314 = vmatpush1.bf16.msra.mxu0 0
    %315 = vmatprep.subr.bf16.mxu0 0
    %316 = vmatpush1.bf16.msra.mxu0 0
    %317 = vmatprep.subr.bf16.mxu0 0
    %318 = vmatpush1.bf16.msra.mxu0 0
    %319 = vmatprep.subr.bf16.mxu0 0
    %320 = vmatpush1.bf16.msra.mxu0 0
    %321 = vmatprep.mubr.bf16.mxu0 0
    %322 = vmatmul.mubr.bf16.gmra.mrb[0].mxu0 %v284
    %v323 = vpop.f32.mrb[0].mxu0
    %v324 = vadd.f32 %v255, %v323
    %v325 = vpop.f32.mrb[0].mxu0
    %v326 = vpop.f32.mrb[0].mxu0
    %v327 = vadd.f32 %v260, %v326
    %v328 = vpop.f32.mrb[0].mxu0
    %329 = vmatprep.mubr.bf16.mxu0 0
    %330 = vmatmul.mubr.bf16.gmra.mrb[0].mxu0 %v287
    %v331 = vpop.f32.mrb[0].mxu0
    %v332 = vadd.f32 %v265, %v331
    %v333 = vpop.f32.mrb[0].mxu0
    %v334 = vpop.f32.mrb[0].mxu0
    %v335 = vadd.f32 %v270, %v334
    %v336 = vpop.f32.mrb[0].mxu0
    %337 = vdwg.mxu0
    %v338 = vmax.f32 %v324, 0.0
    %v339 = vmax.f32 %v327, 0.0
    %v340 = vmax.f32 %v332, 0.0
    %v341 = vmax.f32 %v335, 0.0
    %v342 = vpack.c.bf16 %v339, %v338
    %v343 = vpack.c.bf16 %v341, %v340
    %v344 = vld [vmem:[%s5] sm:$0x1]
    %v345 = vld [vmem:[#allocation2] sm:$0x1]
    %347 = vset.pattern.permute.xlu0 0
    %348 = vperm.xlu0 %347, %v345
    %v349 = vpop.permute.xlu0 %348
    %v351 = vlaneseq
    %v352 = vshrl.u32 %v351, 7
    %v353 = vsub.s32 0, %v352
    %v354 = vrot.slane %v349, %v353
    %vm355 = vcmask 261120
    %v357 = vsel %vm355, %v344, 0
    %359 = vmatprep.subr.bf16.mxu0 0
    %360 = vmatpush1.bf16.msra.mxu0 %v342
    %361 = vmatprep.subr.bf16.mxu0 0
    %362 = vmatpush1.bf16.msra.mxu0 %v343
    %363 = vmatprep.subr.bf16.mxu0 0
    %364 = vmatpush1.bf16.msra.mxu0 0
    %365 = vmatprep.subr.bf16.mxu0 0
    %366 = vmatpush1.bf16.msra.mxu0 0
    %367 = vmatprep.subr.bf16.mxu0 0
    %368 = vmatpush1.bf16.msra.mxu0 0
    %369 = vmatprep.subr.bf16.mxu0 0
    %370 = vmatpush1.bf16.msra.mxu0 0
    %371 = vmatprep.subr.bf16.mxu0 0
    %372 = vmatpush1.bf16.msra.mxu0 0
    %373 = vmatprep.subr.bf16.mxu0 0
    %374 = vmatpush1.bf16.msra.mxu0 0
    %375 = vmatprep.subr.bf16.mxu0 0
    %376 = vmatpush1.bf16.msra.mxu0 0
    %377 = vmatprep.subr.bf16.mxu0 0
    %378 = vmatpush1.bf16.msra.mxu0 0
    %379 = vmatprep.subr.bf16.mxu0 0
    %380 = vmatpush1.bf16.msra.mxu0 0
    %381 = vmatprep.subr.bf16.mxu0 0
    %382 = vmatpush1.bf16.msra.mxu0 0
    %383 = vmatprep.subr.bf16.mxu0 0
    %384 = vmatpush1.bf16.msra.mxu0 0
    %385 = vmatprep.subr.bf16.mxu0 0
    %386 = vmatpush1.bf16.msra.mxu0 0
    %387 = vmatprep.subr.bf16.mxu0 0
    %388 = vmatpush1.bf16.msra.mxu0 0
    %389 = vmatprep.subr.bf16.mxu0 0
    %390 = vmatpush1.bf16.msra.mxu0 0
    %391 = vmatprep.mubr.bf16.mxu0 0
    %392 = vmatmul.mubr.bf16.gmra.mrb[0].mxu0 %v357
    %v393 = vpop.f32.mrb[0].mxu0
    %v394 = vadd.f32 %v354, %v393
    %v395 = vpop.f32.mrb[0].mxu0
    %v396 = vpop.f32.mrb[0].mxu0
    %v397 = vpop.f32.mrb[0].mxu0
    %398 = vdwg.mxu0
    %v399 = vxor.u32 %v394, 2147483648
    %v400 = vmul.f32 %v399, 1.442695
    %v401 = vpow.pop %v400
    %v402 = vadd.f32 %v401, 1.0
    %v403 = vrcp.pop %v402
    %v404 = vmul.f32 1.0, %v403
    %405 = vst [vmem:[#allocation3] sm:$0x1] %v404
    // Predicated region
    $region30: #{tpu_custom_call.1} parent=1 // pred_check
      _
    $region31: #{tpu_custom_call.1} parent=1 // pred_check_branch
      %407 = sbr.rel (0) target = $region33
    $region32: #{tpu_custom_call.1} parent=1 // pred_region
      %s409 = ssub.s32 16, 16
      %410 = vsyncadd [#allocation4], %s409
      %s412 = sshll.u32 [#allocation3], 4
      %s413 = int_to_ptr.vmem [resolvable:$true] %s412
      %415 = dma.vmem_to_hbm [thread:$0]  %s413, 16, %s7, [#allocation4]
    $region33: #{tpu_custom_call.1} parent=1 // pred_fallthru
      _
    // Predicated region
    $region34: #{tpu_custom_call.1} parent=1 // pred_check
      _
    $region35: #{tpu_custom_call.1} parent=1 // pred_check_branch
      %417 = sbr.rel (0) target = $region37
    $region36: #{tpu_custom_call.1} parent=1 // pred_region
      %418 = dma.done [#allocation4], 16
    $region37: #{tpu_custom_call.1} parent=1 // pred_fallthru
      _
    %419 = vsyncpa [#allocation4], 1

</llo_original>
